<compile_context>
chip_gen: v6e
topology: v6e:2x2x1
jax: 0.10.0
libtpu: 0.0.40
codegen_flags: <defaults>
</compile_context>

<pallas_src>
import jax
import jax.numpy as jnp
from jax.experimental import pallas as pl
from jax.experimental.pallas import tpu as pltpu

MARGIN = 0.5
EPS = 1e-9


def _make_kernel(n_total, tile_rows):
    def kernel(main_ref, crop1_ref, crop2_ref, labels_ref, out_ref):
        i = pl.program_id(0)

        @pl.when(i == 0)
        def _init():
            out_ref[...] = jnp.zeros_like(out_ref)

        main = main_ref[...].astype(jnp.float32)   # (TN, C)
        c1 = crop1_ref[...].astype(jnp.float32)    # (TN, C)
        c2 = crop2_ref[...].astype(jnp.float32)    # (TN, C)
        lab = labels_ref[...]                      # (TN, 1) int32

        tn, c = main.shape
        col = jax.lax.broadcasted_iota(jnp.int32, (tn, c), 1)   # class index

        # Squared euclidean distances over the class dim.
        d1 = jnp.sum((c1 - main) ** 2, axis=1, keepdims=True)   # (TN, 1)
        d2 = jnp.sum((c2 - main) ** 2, axis=1, keepdims=True)   # (TN, 1)

        # argmax over class dim (first index on ties, matching torch.max).
        m1 = jnp.max(c1, axis=1, keepdims=True)
        m2 = jnp.max(c2, axis=1, keepdims=True)
        pred1 = jnp.min(jnp.where(c1 == m1, col, c), axis=1, keepdims=True)
        pred2 = jnp.min(jnp.where(c2 == m2, col, c), axis=1, keepdims=True)
        same1 = (pred1 == lab).astype(jnp.float32)
        same2 = (pred2 == lab).astype(jnp.float32)

        hinge1 = jnp.maximum(MARGIN - jnp.sqrt(d1 + EPS), 0.0) ** 2
        hinge2 = jnp.maximum(MARGIN - jnp.sqrt(d2 + EPS), 0.0) ** 2
        losses1 = 0.5 * (same1 * d1 + (1.0 - same1) * hinge1)
        losses2 = 0.5 * (same2 * d2 + (1.0 - same2) * hinge2)

        # Cross-entropy on `main` with integer labels (per-row; the mean is
        # applied in the finalize step via the 1/N scale).
        mx = jnp.max(main, axis=1, keepdims=True)
        lse = mx + jnp.log(jnp.sum(jnp.exp(main - mx), axis=1, keepdims=True))
        picked = jnp.sum(jnp.where(col == lab, main, 0.0), axis=1, keepdims=True)

        per_row = 0.1 * (losses1 + losses2) + 0.9 * (lse - picked)   # (TN, 1)

        # Mask rows of a possibly-partial last tile.  All the math above is
        # row-local, so padded-row garbage only affects padded rows, and
        # jnp.where selection does not propagate inf/nan from the discarded
        # branch -- masking per_row alone is sufficient.
        row = i * tile_rows + jax.lax.broadcasted_iota(jnp.int32, (tn, 1), 0)
        per_row = jnp.where(row < n_total, per_row, 0.0)

        out_ref[...] = out_ref[...] + jnp.sum(per_row, axis=0, keepdims=True)

        @pl.when(i == pl.num_programs(0) - 1)
        def _finalize():
            out_ref[...] = out_ref[...] * (1.0 / n_total)

    return kernel


def _choose_tile_rows(n, c, itemsize, max_rows):
    # 3 logits inputs x 2 pipeline buffers per tile must fit in the budget.
    budget_bytes = 12 * 1024 * 1024
    per_row_bytes = max(6 * c * itemsize, 1)
    cap = max(32, (budget_bytes // per_row_bytes) // 32 * 32)
    tn = int(min(n, max_rows, cap))
    if tn < n:
        # sublane-aligned block (multiple of 32 covers f32/bf16/int8 layouts);
        # tn == n (full dim) is always legal regardless of alignment.
        tn = max(32, (tn // 32) * 32)
    return tn


def loss_selfcontrast(main, crop1, crop2, labels, *, block_rows=1024):
    """main/crop1/crop2: (N, C) float (any dtype); labels: (N,) int.

    Returns the scalar loss (float32), matching the PyTorch module forward.
    """
    n, c = main.shape
    itemsize = jnp.dtype(main.dtype).itemsize
    tn = _choose_tile_rows(n, c, itemsize, block_rows)
    num_tiles = pl.cdiv(n, tn)

    labels2d = labels.astype(jnp.int32).reshape(n, 1)

    out = pl.pallas_call(
        _make_kernel(n, tn),
        out_shape=jax.ShapeDtypeStruct((1, 1), jnp.float32),
        grid_spec=pltpu.PrefetchScalarGridSpec(
            num_scalar_prefetch=0,
            grid=(num_tiles,),
            in_specs=[
                pl.BlockSpec((tn, c), lambda i: (i, 0)),
                pl.BlockSpec((tn, c), lambda i: (i, 0)),
                pl.BlockSpec((tn, c), lambda i: (i, 0)),
                pl.BlockSpec((tn, 1), lambda i: (i, 0)),
            ],
            out_specs=pl.BlockSpec((1, 1), lambda i: (0, 0)),
        ),
        compiler_params=pltpu.CompilerParams(
            dimension_semantics=("arbitrary",),   # accumulated reduction axis
            vmem_limit_bytes=32 * 1024 * 1024,
        ),
    )(main, crop1, crop2, labels2d)   # native dtypes: no wrapper up-cast
    return out[0, 0]


def _reference(main, crop1, crop2, labels):
    # pure-JAX reference matching the PyTorch module
    main = main.astype(jnp.float32)
    crop1 = crop1.astype(jnp.float32)
    crop2 = crop2.astype(jnp.float32)
    d1 = jnp.sum((crop1 - main) ** 2, axis=1)
    d2 = jnp.sum((crop2 - main) ** 2, axis=1)
    same1 = (jnp.argmax(crop1, axis=1) == labels).astype(jnp.float32)
    same2 = (jnp.argmax(crop2, axis=1) == labels).astype(jnp.float32)
    l1 = 0.5 * (same1 * d1 + (1 - same1) * jnp.maximum(MARGIN - jnp.sqrt(d1 + EPS), 0.0) ** 2)
    l2 = 0.5 * (same2 * d2 + (1 - same2) * jnp.maximum(MARGIN - jnp.sqrt(d2 + EPS), 0.0) ** 2)
    contra = 0.1 * (l1.mean() + l2.mean())
    lse = jax.nn.logsumexp(main, axis=1)
    picked = jnp.take_along_axis(main, labels[:, None], axis=1)[:, 0]
    ce = jnp.mean(lse - picked)
    return contra + 0.9 * ce


if __name__ == "__main__":
    key = jax.random.PRNGKey(0)
    k1, k2, k3, k4, k5, k6, k7, k8 = jax.random.split(key, 8)

    # --- Test 1: small f32, single tile ---
    N, C = 8, 32
    main = jax.random.normal(k1, (N, C), dtype=jnp.float32)
    crop1 = main + 0.1 * jax.random.normal(k2, (N, C), dtype=jnp.float32)
    crop2 = main + 0.1 * jax.random.normal(k3, (N, C), dtype=jnp.float32)
    labels = jax.random.randint(k4, (N,), 0, C, dtype=jnp.int32)

    out = loss_selfcontrast(main, crop1, crop2, labels)
    jax.block_until_ready(out)
    ref = _reference(main, crop1, crop2, labels)
    assert jnp.allclose(out, ref, rtol=1e-5, atol=1e-5), (out, ref)

    # --- Test 2: bf16 inputs, tiled N with a partial (masked) last tile ---
    N2, C2 = 40, 128
    main2 = jax.random.normal(k5, (N2, C2), dtype=jnp.float32)
    crop1_2 = main2 + 0.1 * jax.random.normal(k6, (N2, C2), dtype=jnp.float32)
    crop2_2 = main2 + 0.1 * jax.random.normal(k7, (N2, C2), dtype=jnp.float32)
    labels2 = jax.random.randint(k8, (N2,), 0, C2, dtype=jnp.int32)
    main2 = main2.astype(jnp.bfloat16)
    crop1_2 = crop1_2.astype(jnp.bfloat16)
    crop2_2 = crop2_2.astype(jnp.bfloat16)

    out2 = loss_selfcontrast(main2, crop1_2, crop2_2, labels2, block_rows=32)
    jax.block_until_ready(out2)
    ref2 = _reference(main2, crop1_2, crop2_2, labels2)
    assert jnp.allclose(out2, ref2, rtol=1e-4, atol=1e-4), (out2, ref2)

    print("KERNEL_OK")
</pallas_src>

<mosaic_0001>
module attributes {stable_mosaic.version = 11 : i64} {
  func.func @kernel(%arg0: i32, %arg1: memref<8x32xf32, #tpu.memory_space<vmem>>, %arg2: memref<8x32xf32, #tpu.memory_space<vmem>>, %arg3: memref<8x32xf32, #tpu.memory_space<vmem>>, %arg4: memref<8x1xi32, #tpu.memory_space<vmem>>, %arg5: memref<1x1xf32, #tpu.memory_space<vmem>>) attributes {dimension_semantics = [#tpu.dimension_semantics<arbitrary>], iteration_bounds = array<i64: 1>, scalar_prefetch = 0 : i64, scratch_operands = 0 : i64, tpu.core_type = #tpu.core_type<tc>, window_params = [{transform_indices = @transform_0, window_bounds = array<i64: 8, 32>}, {transform_indices = @transform_1, window_bounds = array<i64: 8, 32>}, {transform_indices = @transform_2, window_bounds = array<i64: 8, 32>}, {transform_indices = @transform_3, window_bounds = array<i64: 8, 1>}, {pipeline_mode = #tpu.pipeline_mode<synchronous>, transform_indices = @transform_4, window_bounds = array<i64: 1, 1>}]} {
    %c0_i32 = arith.constant 0 : i32
    %0 = arith.cmpi eq, %arg0, %c0_i32 : i32
    %1 = arith.extui %0 : i1 to i32
    %c0_i32_0 = arith.constant 0 : i32
    %2 = arith.cmpi ne, %1, %c0_i32_0 : i32
    scf.if %2 {
      %cst_39 = arith.constant 0.000000e+00 : f32
      %106 = vector.broadcast %cst_39 : f32 to vector<1x1xf32>
      %c0_40 = arith.constant 0 : index
      %c0_41 = arith.constant 0 : index
      %107 = vector.load %arg5[%c0_40, %c0_41] : memref<1x1xf32, #tpu.memory_space<vmem>>, vector<1x1xf32>
      tpu.vector_store %arg5[%c0_40, %c0_41], %106 {strides = array<i32>} : memref<1x1xf32, #tpu.memory_space<vmem>>, vector<1x1xf32>,
    } else {
    }
    %c0 = arith.constant 0 : index
    %c0_1 = arith.constant 0 : index
    %3 = vector.load %arg1[%c0, %c0_1] : memref<8x32xf32, #tpu.memory_space<vmem>>, vector<8x32xf32>
    %c0_2 = arith.constant 0 : index
    %c0_3 = arith.constant 0 : index
    %4 = vector.load %arg2[%c0_2, %c0_3] : memref<8x32xf32, #tpu.memory_space<vmem>>, vector<8x32xf32>
    %c0_4 = arith.constant 0 : index
    %c0_5 = arith.constant 0 : index
    %5 = vector.load %arg3[%c0_4, %c0_5] : memref<8x32xf32, #tpu.memory_space<vmem>>, vector<8x32xf32>
    %c0_6 = arith.constant 0 : index
    %c0_7 = arith.constant 0 : index
    %6 = vector.load %arg4[%c0_6, %c0_7] : memref<8x1xi32, #tpu.memory_space<vmem>>, vector<8x1xi32>
    %7 = tpu.iota {dimensions = array<i32: 1>} : vector<8x32xi32>
    %8 = arith.subf %4, %3 : vector<8x32xf32>
    %9 = arith.mulf %8, %8 : vector<8x32xf32>
    %cst = arith.constant dense<0.000000e+00> : vector<8xf32>
    %10 = vector.multi_reduction <add>, %9, %cst [1] : vector<8x32xf32> to vector<8xf32>
    %11 = vector.shape_cast %10 : vector<8xf32> to vector<8x1xf32>
    %12 = arith.subf %5, %3 : vector<8x32xf32>
    %13 = arith.mulf %12, %12 : vector<8x32xf32>
    %cst_8 = arith.constant dense<0.000000e+00> : vector<8xf32>
    %14 = vector.multi_reduction <add>, %13, %cst_8 [1] : vector<8x32xf32> to vector<8xf32>
    %15 = vector.shape_cast %14 : vector<8xf32> to vector<8x1xf32>
    %cst_9 = arith.constant dense<0xFF800000> : vector<8xf32>
    %16 = vector.multi_reduction <maximumf>, %4, %cst_9 [1] : vector<8x32xf32> to vector<8xf32>
    %17 = vector.shape_cast %16 : vector<8xf32> to vector<8x1xf32>
    %cst_10 = arith.constant dense<0xFF800000> : vector<8xf32>
    %18 = vector.multi_reduction <maximumf>, %5, %cst_10 [1] : vector<8x32xf32> to vector<8xf32>
    %19 = vector.shape_cast %18 : vector<8xf32> to vector<8x1xf32>
    %20 = vector.broadcast %17 : vector<8x1xf32> to vector<8x32xf32>
    %21 = arith.cmpf oeq, %4, %20 : vector<8x32xf32>
    %c32_i32 = arith.constant 32 : i32
    %22 = vector.broadcast %c32_i32 : i32 to vector<8x32xi32>
    %23 = arith.select %21, %7, %22 : vector<8x32xi1>, vector<8x32xi32>
    %cst_11 = arith.constant dense<2147483647> : vector<8xi32>
    %24 = vector.multi_reduction <minsi>, %23, %cst_11 [1] : vector<8x32xi32> to vector<8xi32>
    %25 = vector.shape_cast %24 : vector<8xi32> to vector<8x1xi32>
    %26 = vector.broadcast %19 : vector<8x1xf32> to vector<8x32xf32>
    %27 = arith.cmpf oeq, %5, %26 : vector<8x32xf32>
    %c32_i32_12 = arith.constant 32 : i32
    %28 = vector.broadcast %c32_i32_12 : i32 to vector<8x32xi32>
    %29 = arith.select %27, %7, %28 : vector<8x32xi1>, vector<8x32xi32>
    %cst_13 = arith.constant dense<2147483647> : vector<8xi32>
    %30 = vector.multi_reduction <minsi>, %29, %cst_13 [1] : vector<8x32xi32> to vector<8xi32>
    %31 = vector.shape_cast %30 : vector<8xi32> to vector<8x1xi32>
    %32 = arith.cmpi eq, %25, %6 : vector<8x1xi32>
    %33 = arith.extui %32 : vector<8x1xi1> to vector<8x1xi32>
    %34 = arith.sitofp %33 : vector<8x1xi32> to vector<8x1xf32>
    %35 = arith.cmpi eq, %31, %6 : vector<8x1xi32>
    %36 = arith.extui %35 : vector<8x1xi1> to vector<8x1xi32>
    %37 = arith.sitofp %36 : vector<8x1xi32> to vector<8x1xf32>
    %cst_14 = arith.constant 9.99999971E-10 : f32
    %38 = vector.broadcast %cst_14 : f32 to vector<8x1xf32>
    %39 = arith.addf %11, %38 : vector<8x1xf32>
    %40 = math.sqrt %39 : vector<8x1xf32>
    %cst_15 = arith.constant 5.000000e-01 : f32
    %41 = vector.broadcast %cst_15 : f32 to vector<8x1xf32>
    %42 = arith.subf %41, %40 : vector<8x1xf32>
    %cst_16 = arith.constant 0.000000e+00 : f32
    %43 = vector.broadcast %cst_16 : f32 to vector<8x1xf32>
    %44 = arith.maximumf %42, %43 : vector<8x1xf32>
    %45 = arith.mulf %44, %44 : vector<8x1xf32>
    %cst_17 = arith.constant 9.99999971E-10 : f32
    %46 = vector.broadcast %cst_17 : f32 to vector<8x1xf32>
    %47 = arith.addf %15, %46 : vector<8x1xf32>
    %48 = math.sqrt %47 : vector<8x1xf32>
    %cst_18 = arith.constant 5.000000e-01 : f32
    %49 = vector.broadcast %cst_18 : f32 to vector<8x1xf32>
    %50 = arith.subf %49, %48 : vector<8x1xf32>
    %cst_19 = arith.constant 0.000000e+00 : f32
    %51 = vector.broadcast %cst_19 : f32 to vector<8x1xf32>
    %52 = arith.maximumf %50, %51 : vector<8x1xf32>
    %53 = arith.mulf %52, %52 : vector<8x1xf32>
    %54 = arith.mulf %34, %11 : vector<8x1xf32>
    %cst_20 = arith.constant 1.000000e+00 : f32
    %55 = vector.broadcast %cst_20 : f32 to vector<8x1xf32>
    %56 = arith.subf %55, %34 : vector<8x1xf32>
    %57 = arith.mulf %56, %45 : vector<8x1xf32>
    %58 = arith.addf %54, %57 : vector<8x1xf32>
    %cst_21 = arith.constant 5.000000e-01 : f32
    %59 = vector.broadcast %cst_21 : f32 to vector<8x1xf32>
    %60 = arith.mulf %59, %58 : vector<8x1xf32>
    %61 = arith.mulf %37, %15 : vector<8x1xf32>
    %cst_22 = arith.constant 1.000000e+00 : f32
    %62 = vector.broadcast %cst_22 : f32 to vector<8x1xf32>
    %63 = arith.subf %62, %37 : vector<8x1xf32>
    %64 = arith.mulf %63, %53 : vector<8x1xf32>
    %65 = arith.addf %61, %64 : vector<8x1xf32>
    %cst_23 = arith.constant 5.000000e-01 : f32
    %66 = vector.broadcast %cst_23 : f32 to vector<8x1xf32>
    %67 = arith.mulf %66, %65 : vector<8x1xf32>
    %cst_24 = arith.constant dense<0xFF800000> : vector<8xf32>
    %68 = vector.multi_reduction <maximumf>, %3, %cst_24 [1] : vector<8x32xf32> to vector<8xf32>
    %69 = vector.shape_cast %68 : vector<8xf32> to vector<8x1xf32>
    %70 = vector.broadcast %69 : vector<8x1xf32> to vector<8x32xf32>
    %71 = arith.subf %3, %70 : vector<8x32xf32>
    %72 = math.exp %71 : vector<8x32xf32>
    %cst_25 = arith.constant dense<0.000000e+00> : vector<8xf32>
    %73 = vector.multi_reduction <add>, %72, %cst_25 [1] : vector<8x32xf32> to vector<8xf32>
    %74 = vector.shape_cast %73 : vector<8xf32> to vector<8x1xf32>
    %75 = math.log %74 : vector<8x1xf32>
    %76 = arith.addf %69, %75 : vector<8x1xf32>
    %77 = vector.broadcast %6 : vector<8x1xi32> to vector<8x32xi32>
    %78 = arith.cmpi eq, %7, %77 : vector<8x32xi32>
    %cst_26 = arith.constant 0.000000e+00 : f32
    %79 = vector.broadcast %cst_26 : f32 to vector<8x32xf32>
    %80 = arith.select %78, %3, %79 : vector<8x32xi1>, vector<8x32xf32>
    %cst_27 = arith.constant dense<0.000000e+00> : vector<8xf32>
    %81 = vector.multi_reduction <add>, %80, %cst_27 [1] : vector<8x32xf32> to vector<8xf32>
    %82 = vector.shape_cast %81 : vector<8xf32> to vector<8x1xf32>
    %83 = arith.addf %60, %67 : vector<8x1xf32>
    %cst_28 = arith.constant 1.000000e-01 : f32
    %84 = vector.broadcast %cst_28 : f32 to vector<8x1xf32>
    %85 = arith.mulf %84, %83 : vector<8x1xf32>
    %86 = arith.subf %76, %82 : vector<8x1xf32>
    %cst_29 = arith.constant 0.899999976 : f32
    %87 = vector.broadcast %cst_29 : f32 to vector<8x1xf32>
    %88 = arith.mulf %87, %86 : vector<8x1xf32>
    %89 = arith.addf %85, %88 : vector<8x1xf32>
    %c8_i32 = arith.constant 8 : i32
    %90 = arith.muli %arg0, %c8_i32 : i32
    %91 = tpu.iota {dimensions = array<i32: 0>} : vector<8x1xi32>
    %92 = vector.broadcast %90 : i32 to vector<8x1xi32>
    %93 = arith.addi %92, %91 : vector<8x1xi32>
    %c8_i32_30 = arith.constant 8 : i32
    %94 = vector.broadcast %c8_i32_30 : i32 to vector<8x1xi32>
    %95 = arith.cmpi slt, %93, %94 : vector<8x1xi32>
    %cst_31 = arith.constant 0.000000e+00 : f32
    %96 = vector.broadcast %cst_31 : f32 to vector<8x1xf32>
    %97 = arith.select %95, %89, %96 : vector<8x1xi1>, vector<8x1xf32>
    %c0_32 = arith.constant 0 : index
    %c0_33 = arith.constant 0 : index
    %98 = vector.load %arg5[%c0_32, %c0_33] : memref<1x1xf32, #tpu.memory_space<vmem>>, vector<1x1xf32>
    %cst_34 = arith.constant dense<0.000000e+00> : vector<1xf32>
    %99 = vector.multi_reduction <add>, %97, %cst_34 [0] : vector<8x1xf32> to vector<1xf32>
    %100 = vector.shape_cast %99 : vector<1xf32> to vector<1x1xf32>
    %101 = arith.addf %98, %100 : vector<1x1xf32>
    %c0_35 = arith.constant 0 : index
    %c0_36 = arith.constant 0 : index
    %102 = vector.load %arg5[%c0_35, %c0_36] : memref<1x1xf32, #tpu.memory_space<vmem>>, vector<1x1xf32>
    tpu.vector_store %arg5[%c0_35, %c0_36], %101 {strides = array<i32>} : memref<1x1xf32, #tpu.memory_space<vmem>>, vector<1x1xf32>,
    %c0_i32_37 = arith.constant 0 : i32
    %103 = arith.cmpi eq, %arg0, %c0_i32_37 : i32
    %104 = arith.extui %103 : i1 to i32
    %c0_i32_38 = arith.constant 0 : i32
    %105 = arith.cmpi ne, %104, %c0_i32_38 : i32
    scf.if %105 {
      %c0_39 = arith.constant 0 : index
      %c0_40 = arith.constant 0 : index
      %106 = vector.load %arg5[%c0_39, %c0_40] : memref<1x1xf32, #tpu.memory_space<vmem>>, vector<1x1xf32>
      %cst_41 = arith.constant 1.250000e-01 : f32
      %107 = vector.broadcast %cst_41 : f32 to vector<1x1xf32>
      %108 = arith.mulf %106, %107 : vector<1x1xf32>
      %c0_42 = arith.constant 0 : index
      %c0_43 = arith.constant 0 : index
      %109 = vector.load %arg5[%c0_42, %c0_43] : memref<1x1xf32, #tpu.memory_space<vmem>>, vector<1x1xf32>
      tpu.vector_store %arg5[%c0_42, %c0_43], %108 {strides = array<i32>} : memref<1x1xf32, #tpu.memory_space<vmem>>, vector<1x1xf32>,
    } else {
    }
    return
  }
  func.func @transform_0(%arg0: i32) -> (i32, i32) {
    %c0_i32 = arith.constant 0 : i32
    %c0_i32_0 = arith.constant 0 : i32
    return %arg0, %c0_i32 : i32, i32
  }
  func.func @transform_1(%arg0: i32) -> (i32, i32) {
    %c0_i32 = arith.constant 0 : i32
    %c0_i32_0 = arith.constant 0 : i32
    return %arg0, %c0_i32 : i32, i32
  }
  func.func @transform_2(%arg0: i32) -> (i32, i32) {
    %c0_i32 = arith.constant 0 : i32
    %c0_i32_0 = arith.constant 0 : i32
    return %arg0, %c0_i32 : i32, i32
  }
  func.func @transform_3(%arg0: i32) -> (i32, i32) {
    %c0_i32 = arith.constant 0 : i32
    %c0_i32_0 = arith.constant 0 : i32
    return %arg0, %c0_i32 : i32, i32
  }
  func.func @transform_4(%arg0: i32) -> (i32, i32) {
    %c0_i32 = arith.constant 0 : i32
    %c0_i32_0 = arith.constant 0 : i32
    %c0_i32_1 = arith.constant 0 : i32
    return %c0_i32, %c0_i32_0 : i32, i32
  }
}

</mosaic_0001>

<llo_original>
// kernel: tpu_custom_call.1
$region0: #{tpu_custom_call.1}
  #allocation0 [shape = 'u32[]', space=smem, size = 0x4, offset = 0x4, fixed_abs, tag = 'smem constant byte address 0x4 - core index']
  #allocation1 [shape = 'u32[144,128]{1,0:T(1,128)}', space=vmem, size = 0x12000, scoped, tag = 'internal scratch']
  %s0 = inlined_call_operand.vmem [shape: f32[8,32], index: 0, kind: input, shape index: {}]
  %s1 = inlined_call_operand.hbm [shape: f32[8,32], index: 1, kind: input, shape index: {}]
  %s2 = inlined_call_operand.hbm [shape: f32[8,32], index: 2, kind: input, shape index: {}]
  %s3 = inlined_call_operand.vmem [shape: s32[8,1], index: 3, kind: input, shape index: {}]
  %s4 = inlined_call_operand.hbm [shape: f32[1,1], index: 4, kind: output, shape index: {}]
  %s5 = sld [smem:[#allocation0]]
  $region42: #{tpu_custom_call.1} parent=0
    _
  %s7 = ssub.s32 1, %s5
  %s8 = scalar_select 0, %s7, %s5
  $region1: #{tpu_custom_call.1} parent=0
    #allocation2 [shape = 'u8[4096]{0}', space=vmem, size = 0x1000, scoped, tag = 'input window, operand 1, single buffered']
    #allocation3 [shape = 's32[1]{0}', space=sflag, size = 0x4, scoped, tag = 'scoped memory for tpu_custom_call.1']
    #allocation4 [shape = 's32[1]{0}', space=sflag, size = 0x4, scoped, tag = 'scoped memory for tpu_custom_call.1']
    #allocation5 [shape = 'u8[4096]{0}', space=vmem, size = 0x1000, scoped, tag = 'input window, operand 2, single buffered']
    #allocation6 [shape = 's32[1]{0}', space=sflag, size = 0x4, scoped, tag = 'scoped memory for tpu_custom_call.1']
    #allocation7 [shape = 'u8[512]{0}', space=vmem, size = 0x400, scoped, tag = 'output window, operand 0, single buffered']
    %9 = vsyncpa [#allocation3], 0
    %10 = vsyncpa [#allocation6], 0
    %11 = vsyncpa [#allocation4], 0
    // Predicated region
    $region2: #{tpu_custom_call.1} parent=1 // pred_check
      _
    $region3: #{tpu_custom_call.1} parent=1 // pred_check_branch
      %13 = sbr.rel (0) target = $region5
    $region4: #{tpu_custom_call.1} parent=1 // pred_region
      _
    $region5: #{tpu_custom_call.1} parent=1 // pred_fallthru
      _
    // Predicated region
    $region6: #{tpu_custom_call.1} parent=1 // pred_check
      _
    $region7: #{tpu_custom_call.1} parent=1 // pred_check_branch
      %15 = sbr.rel (0) target = $region9
    $region8: #{tpu_custom_call.1} parent=1 // pred_region
      %s17 = ssub.s32 128, 128
      %18 = vsyncadd [#allocation3], %s17
      %s20 = sshll.u32 [#allocation2], 4
      %s21 = int_to_ptr.vmem [resolvable:$true] %s20
      %23 = dma.hbm_to_vmem [thread:$0]  %s1, 128, %s21, [#allocation3]
    $region9: #{tpu_custom_call.1} parent=1 // pred_fallthru
      _
    // Predicated region
    $region10: #{tpu_custom_call.1} parent=1 // pred_check
      _
    $region11: #{tpu_custom_call.1} parent=1 // pred_check_branch
      %25 = sbr.rel (0) target = $region13
    $region12: #{tpu_custom_call.1} parent=1 // pred_region
      %s27 = ssub.s32 128, 128
      %28 = vsyncadd [#allocation6], %s27
      %s30 = sshll.u32 [#allocation5], 4
      %s31 = int_to_ptr.vmem [resolvable:$true] %s30
      %33 = dma.hbm_to_vmem [thread:$0]  %s2, 128, %s31, [#allocation6]
    $region13: #{tpu_custom_call.1} parent=1 // pred_fallthru
      _
    // Predicated region
    $region14: #{tpu_custom_call.1} parent=1 // pred_check
      _
    $region15: #{tpu_custom_call.1} parent=1 // pred_check_branch
      %35 = sbr.rel (0) target = $region17
    $region16: #{tpu_custom_call.1} parent=1 // pred_region
      _
    $region17: #{tpu_custom_call.1} parent=1 // pred_fallthru
      _
    // Predicated region
    $region18: #{tpu_custom_call.1} parent=1 // pred_check
      _
    $region19: #{tpu_custom_call.1} parent=1 // pred_check_branch
      %37 = sbr.rel (0) target = $region21
    $region20: #{tpu_custom_call.1} parent=1 // pred_region
      %38 = dma.done [#allocation3], 128
    $region21: #{tpu_custom_call.1} parent=1 // pred_fallthru
      _
    // Predicated region
    $region22: #{tpu_custom_call.1} parent=1 // pred_check
      _
    $region23: #{tpu_custom_call.1} parent=1 // pred_check_branch
      %40 = sbr.rel (0) target = $region25
    $region24: #{tpu_custom_call.1} parent=1 // pred_region
      %41 = dma.done [#allocation6], 128
    $region25: #{tpu_custom_call.1} parent=1 // pred_fallthru
      _
    %p42 = scmp.eq.s32.totalorder 0, 0
    // Predicated region
    $region26: #{tpu_custom_call.1} parent=1 // pred_check
      %p43 = pneg %p42
    $region27: #{tpu_custom_call.1} parent=1 // pred_check_branch
      %45 = sbr.rel (%p43) target = $region29
    $region28: #{tpu_custom_call.1} parent=1 // pred_region
      %vm46 = vcmask 0
      %47 = vst.msk [vmem:[#allocation7] sm:$0x1] %vm46, 0.0
    $region29: #{tpu_custom_call.1} parent=1 // pred_fallthru
      _
    %v48 = vld [vmem:[%s0] sm:$0xff]
    %v49 = vld [vmem:[#allocation2] sm:$0xff]
    %v50 = vld [vmem:[#allocation5] sm:$0xff]
    %v51 = vld [vmem:[%s3] sm:$0xff]
    %v52 = vlaneseq
    %v53 = vand.u32 %v52, 127
    %v54 = vsub.f32 %v49, %v48
    %v55 = vmul.f32 %v54, %v54
    %vm56 = vcmask 261120
    %v57 = vsel %vm56, %v55, 0.0
    %58 = vadd.xlane.f32.xlu0 %v57
    %v59 = vpop.xlane.xlu0 %58
    %v60 = vsub.f32 %v50, %v48
    %v61 = vmul.f32 %v60, %v60
    %v62 = vsel %vm56, %v61, 0.0
    %63 = vadd.xlane.f32.xlu0 %v62
    %v64 = vpop.xlane.xlu0 %63
    %v65 = vsel %vm56, %v49, -inf
    %66 = vmax.xlane.f32.xlu0 %v65
    %v67 = vpop.xlane.xlu0 %66
    %v68 = vsel %vm56, %v50, -inf
    %69 = vmax.xlane.f32.xlu0 %v68
    %v70 = vpop.xlane.xlu0 %69
    %vm71 = vcmp.eq.f32.partialorder %v49, %v67
    %v72 = vsel %vm71, %v53, 32
    %v73 = vsel %vm56, %v72, 2147483647
    %v74 = vand.u32 %v73, 65535
    %v75 = vshra.s32 %v73, 16
    %v76 = vcvt.s32.f32 %v74
    %v77 = vcvt.s32.f32 %v75
    %78 = vmin.xlane.f32.xlu0 %v77
    %v79 = vpop.xlane.xlu0 %78
    %vm80 = vcmp.eq.f32.partialorder %v77, %v79
    %v81 = vsel %vm80, %v76, inf
    %82 = vmin.xlane.f32.xlu0 %v81
    %v83 = vpop.xlane.xlu0 %82
    %v84 = vcvt.f32.s32 %v83
    %v85 = vcvt.f32.s32 %v79
    %v86 = vshll.u32 %v85, 16
    %v87 = vadd.s32 %v86, %v84
    %vm88 = vcmp.eq.f32.partialorder %v50, %v70
    %v89 = vsel %vm88, %v53, 32
    %v90 = vsel %vm56, %v89, 2147483647
    %v91 = vand.u32 %v90, 65535
    %v92 = vshra.s32 %v90, 16
    %v93 = vcvt.s32.f32 %v91
    %v94 = vcvt.s32.f32 %v92
    %95 = vmin.xlane.f32.xlu0 %v94
    %v96 = vpop.xlane.xlu0 %95
    %vm97 = vcmp.eq.f32.partialorder %v94, %v96
    %v98 = vsel %vm97, %v93, inf
    %99 = vmin.xlane.f32.xlu0 %v98
    %v100 = vpop.xlane.xlu0 %99
    %v101 = vcvt.f32.s32 %v100
    %v102 = vcvt.f32.s32 %v96
    %v103 = vshll.u32 %v102, 16
    %v104 = vadd.s32 %v103, %v101
    %vm105 = vcmp.eq.s32.totalorder %v87, %v51
    %v106 = vsel %vm105, 1, 0
    %v107 = vcvt.s32.f32 %v106
    %vm108 = vcmp.eq.s32.totalorder %v104, %v51
    %v109 = vsel %vm108, 1, 0
    %v110 = vcvt.s32.f32 %v109
    %v111 = vadd.f32 %v59, 1e-09
    %v112 = vrsqrt.pop %v111
    %v113 = vmul.f32 %v111, %v112
    %vm114 = vcmp.eq.f32.partialorder %v111, inf
    %v115 = vsel %vm114, %v111, %v113
    %vm116 = vcmp.eq.f32.partialorder %v111, 0.0
    %v117 = vand.u32 %v111, 2147483648
    %v118 = vsel %vm116, %v117, %v115
    %v119 = vsub.f32 0.5, %v118
    %v120 = vmax.f32 %v119, 0.0
    %v121 = vmul.f32 %v120, %v120
    %v122 = vadd.f32 %v64, 1e-09
    %v123 = vrsqrt.pop %v122
    %v124 = vmul.f32 %v122, %v123
    %vm125 = vcmp.eq.f32.partialorder %v122, inf
    %v126 = vsel %vm125, %v122, %v124
    %vm127 = vcmp.eq.f32.partialorder %v122, 0.0
    %v128 = vand.u32 %v122, 2147483648
    %v129 = vsel %vm127, %v128, %v126
    %v130 = vsub.f32 0.5, %v129
    %v131 = vmax.f32 %v130, 0.0
    %v132 = vmul.f32 %v131, %v131
    %v133 = vmul.f32 %v107, %v59
    %v134 = vsub.f32 1.0, %v107
    %v135 = vmul.f32 %v134, %v121
    %v136 = vadd.f32 %v133, %v135
    %v137 = vmul.f32 %v136, 0.5
    %v138 = vmul.f32 %v110, %v64
    %v139 = vsub.f32 1.0, %v110
    %v140 = vmul.f32 %v139, %v132
    %v141 = vadd.f32 %v138, %v140
    %v142 = vmul.f32 %v141, 0.5
    %v143 = vsel %vm56, %v48, -inf
    %144 = vmax.xlane.f32.xlu0 %v143
    %v145 = vpop.xlane.xlu0 %144
    %v146 = vsub.f32 %v48, %v145
    %v147 = vmul.f32 %v146, 1.442695
    %v148 = vpow.pop %v147
    %v149 = vsel %vm56, %v148, 0.0
    %150 = vadd.xlane.f32.xlu0 %v149
    %v151 = vpop.xlane.xlu0 %150
    %v152 = vlog2.pop %v151
    %v153 = vmul.f32 %v152, 0.6931472
    %v154 = vadd.f32 %v145, %v153
    %155 = vset.pattern.permute.xlu0 0
    %156 = vperm.xlu0 %155, %v51
    %v157 = vpop.permute.xlu0 %156
    %vm158 = vcmp.eq.s32.totalorder %v53, %v157
    %v159 = vsel %vm158, %v48, 0.0
    %v160 = vsel %vm56, %v159, 0.0
    %161 = vadd.xlane.f32.xlu0 %v160
    %v162 = vpop.xlane.xlu0 %161
    %v163 = vadd.f32 %v137, %v142
    %v164 = vmul.f32 %v163, 0.1
    %v165 = vsub.f32 %v154, %v162
    %v166 = vmul.f32 %v165, 0.9
    %v167 = vadd.f32 %v164, %v166
    %s168 = smul.u32 0, 8
    %v169 = vlaneseq
    %v170 = vshrl.u32 %v169, 7
    %v171 = vstv %s168
    %v172 = vadd.s32 %v171, %v170
    %vm173 = vcmp.lt.s32.totalorder %v172, 8
    %v174 = vsel %vm173, %v167, 0.0
    %v175 = vld [vmem:[#allocation7] sm:$0x1]
    %vm176 = vcmask 7168
    %v177 = vsel %vm176, %v174, 0.0
    %v178 = vrot.slane %v177, 4
    %v179 = vadd.f32 %v177, %v178
    %v180 = vrot.slane %v179, 2
    %v181 = vadd.f32 %v179, %v180
    %v182 = vrot.slane %v181, 1
    %v183 = vadd.f32 %v181, %v182
    %v184 = vadd.f32 %v175, %v183
    %vm185 = vcmask 0
    %186 = vst.msk [vmem:[#allocation7] sm:$0x1] %vm185, %v184
    // Predicated region
    $region30: #{tpu_custom_call.1} parent=1 // pred_check
      %p187 = pneg %p42
    $region31: #{tpu_custom_call.1} parent=1 // pred_check_branch
      %189 = sbr.rel (%p187) target = $region33
    $region32: #{tpu_custom_call.1} parent=1 // pred_region
      %v190 = vld [vmem:[#allocation7] sm:$0x1]
      %v191 = vmul.f32 %v190, 0.125
      %192 = vst.msk [vmem:[#allocation7] sm:$0x1] %vm185, %v191
    $region33: #{tpu_custom_call.1} parent=1 // pred_fallthru
      _
    // Predicated region
    $region34: #{tpu_custom_call.1} parent=1 // pred_check
      _
    $region35: #{tpu_custom_call.1} parent=1 // pred_check_branch
      %194 = sbr.rel (0) target = $region37
    $region36: #{tpu_custom_call.1} parent=1 // pred_region
      %s196 = ssub.s32 16, 16
      %197 = vsyncadd [#allocation4], %s196
      %s199 = sshll.u32 [#allocation7], 4
      %s200 = int_to_ptr.vmem [resolvable:$true] %s199
      %202 = dma.vmem_to_hbm [thread:$0]  %s200, 16, %s4, [#allocation4]
    $region37: #{tpu_custom_call.1} parent=1 // pred_fallthru
      _
    // Predicated region
    $region38: #{tpu_custom_call.1} parent=1 // pred_check
      _
    $region39: #{tpu_custom_call.1} parent=1 // pred_check_branch
      %204 = sbr.rel (0) target = $region41
    $region40: #{tpu_custom_call.1} parent=1 // pred_region
      %205 = dma.done [#allocation4], 16
    $region41: #{tpu_custom_call.1} parent=1 // pred_fallthru
      _
    %206 = vsyncpa [#allocation3], 1
    %207 = vsyncpa [#allocation6], 1
    %208 = vsyncpa [#allocation4], 1

</llo_original>
